<compile_context>
chip_gen: v7x
topology: tpu7x:2x2x1
jax: 0.10.0
libtpu: 0.0.40
codegen_flags: <defaults>
</compile_context>

<pallas_src>
import jax
import jax.numpy as jnp
from jax import lax
from jax.experimental import pallas as pl
from jax.experimental.pallas import tpu as pltpu

TILE_P = 256    # pixels per grid step (multiple of 128; sweep 128-512 per chip)
E_CHUNK = 256   # contributions per inner MXU step (256 for v6e/v7x; try 128 on v5e)


# ----------------------------------------------------------------------------
# Pallas kernel
# ----------------------------------------------------------------------------
def scatter_timestamp_kernel(lo_ref, hi_ref, evt_ref, out_ref):
    """One (slab, pixel-tile) grid cell.

    lo_ref/hi_ref : (S*p_tiles,) int32 in SMEM (scalar prefetch) — range of
                    E_CHUNK-sized chunks whose contributions can land in this tile.
    evt_ref       : (3, E_pad) f32, rows = [pixel index (int-valued), weight,
                    weight*t], contributions sorted by pixel index (lane-dense).
    out_ref       : (1, TILE_P) f32 — this tile's slice of the refined
                    avg-timestamp image (lane-dense store).
    """
    s = pl.program_id(0)
    p = pl.program_id(1)
    p_tiles = pl.num_programs(1)

    # Pixel ids of this tile as a (TILE_P, 1) float column.  Exact while
    # p_tiles*TILE_P < 2^24 (the sentinel is the tight bound).
    pix = (p * TILE_P
           + lax.broadcasted_iota(jnp.int32, (TILE_P, 1), 0)).astype(jnp.float32)

    flat = s * p_tiles + p
    lo = lo_ref[flat]
    hi = hi_ref[flat]

    def body(c, acc):
        off = pl.multiple_of(c * E_CHUNK, E_CHUNK)
        chunk = evt_ref[:, pl.ds(off, E_CHUNK)]          # one (3, E_CHUNK) load
        idx = chunk[0:1, :]                              # (1, Ec)
        vals = chunk[1:3, :]                             # (2, Ec)  [w, w*t] f32
        # One-hot scatter matrix built directly in bf16 (lossless: 0/1 only).
        match = (idx == pix).astype(jnp.bfloat16)        # (TILE_P, Ec)
        # hi/lo bf16 split keeps ~f32 accuracy while using native bf16 MXU passes
        # (no 3-6x f32 emulation, half the intermediate vreg footprint).
        v_hi = vals.astype(jnp.bfloat16)
        v_lo = (vals - v_hi.astype(jnp.float32)).astype(jnp.bfloat16)
        dn = (((1,), (1,)), ((), ()))
        acc = acc + lax.dot_general(v_hi, match, dn,
                                    preferred_element_type=jnp.float32)
        acc = acc + lax.dot_general(v_lo, match, dn,
                                    preferred_element_type=jnp.float32)
        return acc

    acc = lax.fori_loop(lo, hi, body, jnp.zeros((2, TILE_P), jnp.float32))

    w_sum = acc[0:1, :]
    t_sum = acc[1:2, :]
    # Per-pixel average timestamp; EUP reciprocal (empty pixels give exactly 0).
    out_ref[...] = t_sum * pl.reciprocal(w_sum + 1e-8, approx=True)


def scatter_avg_timestamp_image(evt, lo, hi, p_tiles):
    """evt: (S, 3, E_pad) f32; lo/hi: (S*p_tiles,) int32.

    Returns (S, p_tiles, 1, TILE_P) lane-dense tiles of the refined
    avg-timestamp image; the final scalar sum is done by XLA.
    """
    S, _, E_pad = evt.shape
    # Resident per-slab event block is sublane-padded to 8 rows; keep the scoped
    # VMEM limit explicit (v5e default 16 MiB / v6e 32 MiB would throttle at
    # larger E).  Headroom covers the output buffers + pipeline scratch.
    evt_block_bytes = 8 * E_pad * 4
    vmem_limit = int(min(2 * evt_block_bytes + (16 << 20), 100 << 20))

    out = pl.pallas_call(
        scatter_timestamp_kernel,
        out_shape=jax.ShapeDtypeStruct((S, p_tiles, 1, TILE_P), jnp.float32),
        grid_spec=pltpu.PrefetchScalarGridSpec(
            num_scalar_prefetch=2,
            grid=(S, p_tiles),
            in_specs=[
                # Whole packed contribution stream of the current slab; block
                # index is independent of p, so it is DMA'd once per slab and
                # stays resident across all pixel tiles.
                # TODO(synk): at production E switch this to memory_space=pl.ANY
                # + manual per-chunk double-buffering (v7x 64 MiB VMEM).
                pl.BlockSpec((None, 3, E_pad), lambda s, p, lo, hi: (s, 0, 0)),
            ],
            out_specs=pl.BlockSpec((None, None, 1, TILE_P),
                                   lambda s, p, lo, hi: (s, p, 0, 0)),
        ),
        compiler_params=pltpu.CompilerParams(
            # Slab axis parallel / tile axis arbitrary: v7x megacore shards over
            # slabs (S = 2*B >= 2), so a slab's event stream never has to be
            # DMA'd separately to both TensorCores.
            dimension_semantics=("parallel", "arbitrary"),
            vmem_limit_bytes=vmem_limit),
    )(lo, hi, evt)
    return out


# ----------------------------------------------------------------------------
# Plain-JAX glue reproducing the per-event bookkeeping of the PyTorch module.
# ----------------------------------------------------------------------------
def _calc_floor_ceil_delta(x):
    x_fl = jnp.floor(x + 1e-8)
    x_ce = jnp.ceil(x - 1e-8)
    x_ce_fake = jnp.floor(x) + 1.0
    dx_ce = x - x_fl
    dx_fl = x_ce_fake - x
    return (x_fl.astype(jnp.int32), dx_fl), (x_ce.astype(jnp.int32), dx_ce)


def build_slab_pair(events, events_num, flow, H, W, sentinel):
    """events: (N, 4) f32, events_num: scalar int32, flow: (2, H, W) f32.

    Returns (inds, wgt, wt) each of shape (2, 4N): row 0 = past, row 1 = future.
    """
    N = events.shape[0]
    valid = jnp.arange(N) < events_num

    w = events[:, 0].astype(jnp.int32)
    h = events[:, 1].astype(jnp.int32)
    t = (events[:, 2] - events[0, 2]).astype(jnp.float32)
    pol = events[:, 3]

    t_last = jnp.take(t, events_num - 1)
    # TODO(synk): when events_num == 1 (t_last == 0) ratio is NaN/inf, exactly
    # matching the reference's t / t[-1] behavior.
    ratio = t / t_last

    # Reference uses HEIGHT * h + w to index flow.view(-1); replicated verbatim.
    flat_idx = H * h + w
    fu = flow[0].reshape(-1)[flat_idx]
    fv = flow[1].reshape(-1)[flat_idx]

    vol_mul = jnp.where(pol > 0, 1, 0).astype(jnp.int32)

    def one_direction(du, dv):
        w_ref = w.astype(jnp.float32) + du
        h_ref = h.astype(jnp.float32) + dv
        (wf, dwf), (wc, dwc) = _calc_floor_ceil_delta(w_ref)
        (hf, dhf), (hc, dhc) = _calc_floor_ceil_delta(h_ref)
        wf = jnp.clip(wf, 0, W - 1)
        wc = jnp.clip(wc, 0, W - 1)
        hf = jnp.clip(hf, 0, H - 1)
        hc = jnp.clip(hc, 0, H - 1)

        def corner(wi, dw, hi, dh):
            inds = H * W * vol_mul + W * (hi - 1) + wi
            # torch .put_ negative-index wrap (only reachable for clamped h == 0)
            inds = jnp.where(inds < 0, inds + 2 * H * W, inds)
            inds = jnp.where(valid, inds, sentinel)     # masked events -> no tile
            wgt = jnp.where(valid, dw * dh, 0.0)
            return inds, wgt, wgt * t

        cs = [corner(wf, dwf, hf, dhf), corner(wf, dwf, hc, dhc),
              corner(wc, dwc, hf, dhf), corner(wc, dwc, hc, dhc)]
        inds = jnp.concatenate([c[0] for c in cs])
        wgt = jnp.concatenate([c[1] for c in cs])
        wt = jnp.concatenate([c[2] for c in cs])
        return inds, wgt, wt

    past = one_direction(-ratio * fu, -ratio * fv)
    future = one_direction((1.0 - ratio) * fu, (1.0 - ratio) * fv)

    inds = jnp.stack([past[0], future[0]]).astype(jnp.int32)
    wgt = jnp.stack([past[1], future[1]]).astype(jnp.float32)
    wt = jnp.stack([past[2], future[2]]).astype(jnp.float32)
    return inds, wgt, wt


def build_contributions(events, events_num, opt_flow, H, W, sentinel):
    """Returns inds (S, E) int32, wgt (S, E) f32, wt (S, E) f32 with S = 2*B."""
    inds, wgt, wt = jax.vmap(
        lambda ev, n, fl: build_slab_pair(ev, n, fl, H, W, sentinel)
    )(events, events_num, opt_flow)
    B = events.shape[0]
    E = inds.shape[-1]
    return inds.reshape(B * 2, E), wgt.reshape(B * 2, E), wt.reshape(B * 2, E)


def refine_timestamp_loss_forward(events, events_num, opt_flow, volume_size):
    """events: (B,N,4), events_num: (B,), opt_flow: (B,2,H,W), volume_size=(H,W)."""
    H, W = volume_size
    num_pixels = 2 * H * W
    p_tiles = int(pl.cdiv(num_pixels, TILE_P))
    sentinel = p_tiles * TILE_P          # sorts masked/padded entries past all tiles

    inds, wgt, wt = build_contributions(events, events_num, opt_flow, H, W, sentinel)
    S, E = inds.shape

    # Pad the contribution axis to a lane-dense multiple of E_CHUNK (>= 128).
    pad = (-E) % E_CHUNK
    if pad:
        inds = jnp.pad(inds, ((0, 0), (0, pad)), constant_values=sentinel)
        wgt = jnp.pad(wgt, ((0, 0), (0, pad)))
        wt = jnp.pad(wt, ((0, 0), (0, pad)))
    E_pad = E + pad

    # Single multi-operand sort (co-sorts wgt/wt with the int32 pixel key);
    # replaces argsort + 3 large take_along_axis gathers.
    inds_s, wgt_s, wt_s = lax.sort((inds, wgt, wt), dimension=-1, num_keys=1)

    # Bucket contributions by pixel tile: record the E_CHUNK-chunk range each
    # (slab, tile) has to scan.  Flattened to 1-D to avoid SMEM (8,128) padding.
    bounds = jnp.arange(p_tiles + 1, dtype=jnp.int32) * TILE_P
    pos = jax.vmap(lambda a: jnp.searchsorted(a, bounds, side="left"))(inds_s)
    pos = pos.astype(jnp.int32)
    lo = (pos[:, :-1] // E_CHUNK).reshape(-1)                      # (S*p_tiles,)
    hi = ((pos[:, 1:] + E_CHUNK - 1) // E_CHUNK).reshape(-1)       # (S*p_tiles,)

    # One packed, lane-dense stream per slab: rows = [index, weight, weight*t].
    # TODO(synk): indices stored as f32 (exact for p_tiles*TILE_P < 2^24); switch
    # to a bitcast-packed int row if ever used with larger pixel volumes.
    evt = jnp.stack([inds_s.astype(jnp.float32), wgt_s, wt_s], axis=1)

    tiles = scatter_avg_timestamp_image(evt, lo, hi, p_tiles)
    # Padded tail pixels have zero weight and zero t-sum -> contribute exactly 0.
    return jnp.sum(tiles)


# ----------------------------------------------------------------------------
# Pure-JAX reference for the scatter / divide / sum hot path (for validation).
# ----------------------------------------------------------------------------
def _reference_loss(inds, wgt, wt, num_pixels):
    def per_slab(i, g, v):
        w_sum = jnp.zeros((num_pixels,), jnp.float32).at[i].add(g, mode="drop")
        t_sum = jnp.zeros((num_pixels,), jnp.float32).at[i].add(v, mode="drop")
        return jnp.sum(t_sum / (w_sum + 1e-8))
    return jnp.sum(jax.vmap(per_slab)(inds, wgt, wt))


# ----------------------------------------------------------------------------
if __name__ == "__main__":
    key = jax.random.PRNGKey(0)
    B, N = 2, 200
    H, W = 32, 32

    k1, k2, k3, k4, k5 = jax.random.split(key, 5)
    xs = jax.random.randint(k1, (B, N), 0, W).astype(jnp.float32)
    ys = jax.random.randint(k2, (B, N), 0, H).astype(jnp.float32)
    ts = jnp.sort(jax.random.uniform(k3, (B, N), minval=0.1, maxval=1.0), axis=1)
    ps = jnp.where(jax.random.uniform(k4, (B, N)) > 0.5, 1.0, -1.0)
    events = jnp.stack([xs, ys, ts, ps], axis=-1)            # (B, N, 4)
    events_num = jnp.array([N, N - 17], dtype=jnp.int32)     # per-batch valid counts
    opt_flow = jax.random.uniform(k5, (B, 2, H, W), minval=-1.0, maxval=1.0)

    loss_fn = jax.jit(
        lambda e, n, f: refine_timestamp_loss_forward(e, n, f, (H, W)))
    loss = jax.block_until_ready(loss_fn(events, events_num, opt_flow))

    # validate against the pure-JAX reference of the scatter/divide/sum path
    num_pixels = 2 * H * W
    sentinel = int(pl.cdiv(num_pixels, TILE_P)) * TILE_P
    ri, rg, rv = build_contributions(events, events_num, opt_flow, H, W, sentinel)
    ref = _reference_loss(ri, rg, rv, num_pixels)

    assert jnp.isfinite(loss), "loss is not finite"
    assert jnp.allclose(loss, ref, rtol=1e-2, atol=1e-2), (loss, ref)
    print("KERNEL_OK")
</pallas_src>

<mosaic_0001>
module attributes {stable_mosaic.version = 11 : i64} {
  func.func @scatter_timestamp_kernel(%arg0: i32, %arg1: i32, %arg2: memref<32xi32, #tpu.memory_space<smem>>, %arg3: memref<32xi32, #tpu.memory_space<smem>>, %arg4: memref<1x3x1024xf32, #tpu.memory_space<vmem>>, %arg5: memref<1x1x1x256xf32, #tpu.memory_space<vmem>>) attributes {dimension_semantics = [#tpu.dimension_semantics<parallel>, #tpu.dimension_semantics<arbitrary>], iteration_bounds = array<i64: 4, 8>, scalar_prefetch = 2 : i64, scratch_operands = 0 : i64, tpu.core_type = #tpu.core_type<tc>, window_params = [{transform_indices = @transform_0, window_bounds = array<i64: 1, 3, 1024>}, {transform_indices = @transform_1, window_bounds = array<i64: 1, 1, 1, 256>}]} {
    %c256_i32 = arith.constant 256 : i32
    %0 = arith.muli %arg1, %c256_i32 : i32
    %1 = tpu.iota {dimensions = array<i32: 0>} : vector<256x1xi32>
    %2 = vector.broadcast %0 : i32 to vector<256x1xi32>
    %3 = arith.addi %2, %1 : vector<256x1xi32>
    %4 = arith.sitofp %3 : vector<256x1xi32> to vector<256x1xf32>
    %c8_i32 = arith.constant 8 : i32
    %5 = arith.muli %arg0, %c8_i32 : i32
    %6 = arith.addi %5, %arg1 : i32
    %7 = arith.index_cast %6 : i32 to index
    %8 = memref.load %arg2[%7] : memref<32xi32, #tpu.memory_space<smem>>
    %9 = arith.index_cast %6 : i32 to index
    %10 = memref.load %arg3[%9] : memref<32xi32, #tpu.memory_space<smem>>
    %cst = arith.constant 0.000000e+00 : f32
    %11 = vector.broadcast %cst : f32 to vector<2x256xf32>
    %12 = arith.subi %10, %8 : i32
    %13 = arith.addi %8, %12 : i32
    %c1_i32 = arith.constant 1 : i32
    %14 = scf.for %arg6 = %8 to %13 step %c1_i32 iter_args(%arg7 = %11) -> (vector<2x256xf32>)  : i32 {
      %c256_i32_4 = arith.constant 256 : i32
      %24 = arith.muli %arg6, %c256_i32_4 : i32
      %25 = tpu.assume_multiple %24, 256 : i32
      %c0_5 = arith.constant 0 : index
      %c0_6 = arith.constant 0 : index
      %26 = arith.index_cast %25 : i32 to index
      %27 = vector.load %arg4[%c0_5, %c0_6, %26] : memref<1x3x1024xf32, #tpu.memory_space<vmem>>, vector<1x3x256xf32>
      %28 = vector.shape_cast %27 : vector<1x3x256xf32> to vector<3x256xf32>
      %29 = vector.extract_strided_slice %28 {offsets = [0, 0], sizes = [1, 256], strides = [1, 1]} : vector<3x256xf32> to vector<1x256xf32>
      %30 = vector.extract_strided_slice %28 {offsets = [1, 0], sizes = [2, 256], strides = [1, 1]} : vector<3x256xf32> to vector<2x256xf32>
      %31 = vector.broadcast %29 : vector<1x256xf32> to vector<256x256xf32>
      %32 = vector.broadcast %4 : vector<256x1xf32> to vector<256x256xf32>
      %33 = arith.cmpf oeq, %31, %32 : vector<256x256xf32>
      %34 = arith.extui %33 : vector<256x256xi1> to vector<256x256xi32>
      %35 = arith.sitofp %34 : vector<256x256xi32> to vector<256x256xf32>
      %36 = arith.truncf %35 : vector<256x256xf32> to vector<256x256xbf16>
      %37 = arith.truncf %30 : vector<2x256xf32> to vector<2x256xbf16>
      %38 = arith.extf %37 : vector<2x256xbf16> to vector<2x256xf32>
      %39 = arith.subf %30, %38 : vector<2x256xf32>
      %40 = arith.truncf %39 : vector<2x256xf32> to vector<2x256xbf16>
      %cst_7 = arith.constant dense<0.000000e+00> : vector<2x256xf32>
      %41 = tpu.matmul %37, %36, %cst_7 {dimension_numbers = #tpu.dot_dimension_numbers<[1], [1], [0], [0], [0, 0, 1, 0], [], []>} : vector<2x256xbf16>, vector<256x256xbf16>, vector<2x256xf32> -> vector<2x256xf32>
      %42 = arith.addf %arg7, %41 : vector<2x256xf32>
      %cst_8 = arith.constant dense<0.000000e+00> : vector<2x256xf32>
      %43 = tpu.matmul %40, %36, %cst_8 {dimension_numbers = #tpu.dot_dimension_numbers<[1], [1], [0], [0], [0, 0, 1, 0], [], []>} : vector<2x256xbf16>, vector<256x256xbf16>, vector<2x256xf32> -> vector<2x256xf32>
      %44 = arith.addf %42, %43 : vector<2x256xf32>
      scf.yield %44 : vector<2x256xf32>
    }
    %15 = vector.extract_strided_slice %14 {offsets = [0, 0], sizes = [1, 256], strides = [1, 1]} : vector<2x256xf32> to vector<1x256xf32>
    %16 = vector.extract_strided_slice %14 {offsets = [1, 0], sizes = [1, 256], strides = [1, 1]} : vector<2x256xf32> to vector<1x256xf32>
    %cst_0 = arith.constant 9.99999993E-9 : f32
    %17 = vector.broadcast %cst_0 : f32 to vector<1x256xf32>
    %18 = arith.addf %15, %17 : vector<1x256xf32>
    %19 = tpu.reciprocal %18 {approx = true} : vector<1x256xf32> -> vector<1x256xf32>
    %20 = arith.mulf %16, %19 : vector<1x256xf32>
    %c0 = arith.constant 0 : index
    %c0_1 = arith.constant 0 : index
    %c0_2 = arith.constant 0 : index
    %c0_3 = arith.constant 0 : index
    %21 = vector.load %arg5[%c0, %c0_1, %c0_2, %c0_3] : memref<1x1x1x256xf32, #tpu.memory_space<vmem>>, vector<1x1x1x256xf32>
    %22 = vector.shape_cast %21 : vector<1x1x1x256xf32> to vector<1x256xf32>
    %23 = vector.shape_cast %20 : vector<1x256xf32> to vector<1x1x1x256xf32>
    tpu.vector_store %arg5[%c0, %c0_1, %c0_2, %c0_3], %23 {strides = array<i32>} : memref<1x1x1x256xf32, #tpu.memory_space<vmem>>, vector<1x1x1x256xf32>,
    return
  }
  func.func @transform_0(%arg0: i32, %arg1: i32, %arg2: memref<32xi32, #tpu.memory_space<smem>>, %arg3: memref<32xi32, #tpu.memory_space<smem>>) -> (i32, i32, i32) {
    %c0_i32 = arith.constant 0 : i32
    %c0_i32_0 = arith.constant 0 : i32
    %c0_i32_1 = arith.constant 0 : i32
    return %arg0, %c0_i32, %c0_i32_0 : i32, i32, i32
  }
  func.func @transform_1(%arg0: i32, %arg1: i32, %arg2: memref<32xi32, #tpu.memory_space<smem>>, %arg3: memref<32xi32, #tpu.memory_space<smem>>) -> (i32, i32, i32, i32) {
    %c0_i32 = arith.constant 0 : i32
    %c0_i32_0 = arith.constant 0 : i32
    %c0_i32_1 = arith.constant 0 : i32
    return %arg0, %arg1, %c0_i32, %c0_i32_0 : i32, i32, i32, i32
  }
}

</mosaic_0001>

<llo_original>
// kernel: custom-call.8
$region0: #{custom-call.8}
  %s0 = inlined_call_operand.vmem [shape: u32[4,9], index: 0, kind: output, shape index: {}]

// kernel: squeeze.15
$region0: #{squeeze.15}
  %s0 = inlined_call_operand.vmem [shape: f32[2,1,32,32], index: 0, kind: input, shape index: {}]
  %s1 = inlined_call_operand.vmem [shape: f32[2,1024], index: 1, kind: output, shape index: {}]
  $region1: #{squeeze.15} parent=0
    #allocation0 [shape = 'u8[32768]{0}', space=vmem, size = 0x8000, scoped, tag = 'scoped mem for output reshape']
    %v2 = vld [vmem:[%s0] ss:$4 sm:$0xff]
    %vm3 = vcmask 261120
    %4 = vst.msk [vmem:[#allocation0] ss:$8 sm:$0xf] %vm3, %v2
    %5 = vst.msk [vmem:[#allocation0] ss:$8 sm:$0xf0] %vm3, %v2
    %s6 = scalar_lea.vmem %s0, 32
    %v7 = vld [vmem:[%s6] ss:$4 sm:$0xff]
    %vm8 = vcmask 261120
    %s9 = scalar_lea.vmem [#allocation0], 1
    %10 = vst.msk [vmem:[%s9] ss:$8 sm:$0xf] %vm8, %v7
    %s11 = scalar_lea.vmem [#allocation0], 1
    %12 = vst.msk [vmem:[%s11] ss:$8 sm:$0xf0] %vm8, %v7
    %s13 = scalar_lea.vmem %s0, 3
    %v14 = vld [vmem:[%s13] sm:$0x1]
    %s15 = scalar_lea.vmem %s0, 63
    %s16 = smov 6
    %v17 = vld [vmem:[%s15] ss:$-28 sm:%s16]
    %vm18 = vcmask 1042433
    %v19 = vsel %vm18, %v17, %v14
    %s20 = scalar_lea.vmem %s0, 123
    %s21 = smov 24
    %v22 = vld [vmem:[%s20] ss:$-28 sm:%s21]
    %vm23 = vcmask 1044483
    %v24 = vsel %vm23, %v22, %v19
    %s25 = scalar_lea.vmem %s0, 183
    %s26 = smov 96
    %v27 = vld [vmem:[%s25] ss:$-28 sm:%s26]
    %vm28 = vcmask 1046533
    %v29 = vsel %vm28, %v27, %v24
    %s30 = scalar_lea.vmem %s0, 40
    %v31 = vld [vmem:[%s30] sm:$0x80]
    %vm32 = vcmask 1047559
    %v33 = vsel %vm32, %v31, %v29
    %34 = vrot.lane.b32.xlu0 %v33, 96
    %v35 = vpop.permute.xlu0 %34
    %vm36 = vcmask 1048320
    %37 = vst.msk [vmem:[#allocation0] sm:$0x3] %vm36, %v35
    %s38 = scalar_lea.vmem [#allocation0], 6
    %39 = vst.msk [vmem:[%s38] sm:$0xc] %vm36, %v35
    %s40 = scalar_lea.vmem [#allocation0], 12
    %41 = vst.msk [vmem:[%s40] sm:$0x30] %vm36, %v35
    %s42 = scalar_lea.vmem [#allocation0], 18
    %43 = vst.msk [vmem:[%s42] sm:$0xc0] %vm36, %v35
    %s44 = scalar_lea.vmem %s0, 19
    %v45 = vld [vmem:[%s44] sm:$0x1]
    %s46 = scalar_lea.vmem %s0, 79
    %s47 = smov 6
    %v48 = vld [vmem:[%s46] ss:$-28 sm:%s47]
    %vm49 = vcmask 1042433
    %v50 = vsel %vm49, %v48, %v45
    %s51 = scalar_lea.vmem %s0, 139
    %s52 = smov 24
    %v53 = vld [vmem:[%s51] ss:$-28 sm:%s52]
    %vm54 = vcmask 1044483
    %v55 = vsel %vm54, %v53, %v50
    %s56 = scalar_lea.vmem %s0, 199
    %s57 = smov 96
    %v58 = vld [vmem:[%s56] ss:$-28 sm:%s57]
    %vm59 = vcmask 1046533
    %v60 = vsel %vm59, %v58, %v55
    %s61 = scalar_lea.vmem %s0, 56
    %v62 = vld [vmem:[%s61] sm:$0x80]
    %vm63 = vcmask 1047559
    %v64 = vsel %vm63, %v62, %v60
    %65 = vrot.lane.b32.xlu0 %v64, 96
    %v66 = vpop.permute.xlu0 %65
    %vm67 = vcmask 1048320
    %s68 = scalar_lea.vmem [#allocation0], 32
    %69 = vst.msk [vmem:[%s68] sm:$0x3] %vm67, %v66
    %s70 = scalar_lea.vmem [#allocation0], 38
    %71 = vst.msk [vmem:[%s70] sm:$0xc] %vm67, %v66
    %s72 = scalar_lea.vmem [#allocation0], 44
    %73 = vst.msk [vmem:[%s72] sm:$0x30] %vm67, %v66
    %s74 = scalar_lea.vmem [#allocation0], 50
    %75 = vst.msk [vmem:[%s74] sm:$0xc0] %vm67, %v66
    %s76 = scalar_lea.vmem %s0, 2
    %v77 = vld [vmem:[%s76] sm:$0x1]
    %s78 = scalar_lea.vmem %s0, 62
    %s79 = smov 6
    %v80 = vld [vmem:[%s78] ss:$-28 sm:%s79]
    %vm81 = vcmask 1042433
    %v82 = vsel %vm81, %v80, %v77
    %s83 = scalar_lea.vmem %s0, 122
    %s84 = smov 24
    %v85 = vld [vmem:[%s83] ss:$-28 sm:%s84]
    %vm86 = vcmask 1044483
    %v87 = vsel %vm86, %v85, %v82
    %s88 = scalar_lea.vmem %s0, 182
    %s89 = smov 96
    %v90 = vld [vmem:[%s88] ss:$-28 sm:%s89]
    %vm91 = vcmask 1046533
    %v92 = vsel %vm91, %v90, %v87
    %s93 = scalar_lea.vmem %s0, 39
    %v94 = vld [vmem:[%s93] sm:$0x80]
    %vm95 = vcmask 1047559
    %v96 = vsel %vm95, %v94, %v92
    %97 = vrot.lane.b32.xlu0 %v96, 64
    %v98 = vpop.permute.xlu0 %97
    %vm99 = vcmask 785920
    %100 = vst.msk [vmem:[#allocation0] sm:$0x3] %vm99, %v98
    %s101 = scalar_lea.vmem [#allocation0], 6
    %102 = vst.msk [vmem:[%s101] sm:$0xc] %vm99, %v98
    %s103 = scalar_lea.vmem [#allocation0], 12
    %104 = vst.msk [vmem:[%s103] sm:$0x30] %vm99, %v98
    %s105 = scalar_lea.vmem [#allocation0], 18
    %106 = vst.msk [vmem:[%s105] sm:$0xc0] %vm99, %v98
    %s107 = scalar_lea.vmem %s0, 18
    %v108 = vld [vmem:[%s107] sm:$0x1]
    %s109 = scalar_lea.vmem %s0, 78
    %s110 = smov 6
    %v111 = vld [vmem:[%s109] ss:$-28 sm:%s110]
    %vm112 = vcmask 1042433
    %v113 = vsel %vm112, %v111, %v108
    %s114 = scalar_lea.vmem %s0, 138
    %s115 = smov 24
    %v116 = vld [vmem:[%s114] ss:$-28 sm:%s115]
    %vm117 = vcmask 1044483
    %v118 = vsel %vm117, %v116, %v113
    %s119 = scalar_lea.vmem %s0, 198
    %s120 = smov 96
    %v121 = vld [vmem:[%s119] ss:$-28 sm:%s120]
    %vm122 = vcmask 1046533
    %v123 = vsel %vm122, %v121, %v118
    %s124 = scalar_lea.vmem %s0, 55
    %v125 = vld [vmem:[%s124] sm:$0x80]
    %vm126 = vcmask 1047559
    %v127 = vsel %vm126, %v125, %v123
    %128 = vrot.lane.b32.xlu0 %v127, 64
    %v129 = vpop.permute.xlu0 %128
    %vm130 = vcmask 785920
    %s131 = scalar_lea.vmem [#allocation0], 32
    %132 = vst.msk [vmem:[%s131] sm:$0x3] %vm130, %v129
    %s133 = scalar_lea.vmem [#allocation0], 38
    %134 = vst.msk [vmem:[%s133] sm:$0xc] %vm130, %v129
    %s135 = scalar_lea.vmem [#allocation0], 44
    %136 = vst.msk [vmem:[%s135] sm:$0x30] %vm130, %v129
    %s137 = scalar_lea.vmem [#allocation0], 50
    %138 = vst.msk [vmem:[%s137] sm:$0xc0] %vm130, %v129
    %s139 = scalar_lea.vmem %s0, 1
    %v140 = vld [vmem:[%s139] sm:$0x1]
    %s141 = scalar_lea.vmem %s0, 61
    %s142 = smov 6
    %v143 = vld [vmem:[%s141] ss:$-28 sm:%s142]
    %vm144 = vcmask 1042433
    %v145 = vsel %vm144, %v143, %v140
    %s146 = scalar_lea.vmem %s0, 121
    %s147 = smov 24
    %v148 = vld [vmem:[%s146] ss:$-28 sm:%s147]
    %vm149 = vcmask 1044483
    %v150 = vsel %vm149, %v148, %v145
    %s151 = scalar_lea.vmem %s0, 181
    %s152 = smov 96
    %v153 = vld [vmem:[%s151] ss:$-28 sm:%s152]
    %vm154 = vcmask 1046533
    %v155 = vsel %vm154, %v153, %v150
    %s156 = scalar_lea.vmem %s0, 38
    %v157 = vld [vmem:[%s156] sm:$0x80]
    %vm158 = vcmask 1047559
    %v159 = vsel %vm158, %v157, %v155
    %160 = vrot.lane.b32.xlu0 %v159, 32
    %v161 = vpop.permute.xlu0 %160
    %vm162 = vcmask 523520
    %163 = vst.msk [vmem:[#allocation0] sm:$0x3] %vm162, %v161
    %s164 = scalar_lea.vmem [#allocation0], 6
    %165 = vst.msk [vmem:[%s164] sm:$0xc] %vm162, %v161
    %s166 = scalar_lea.vmem [#allocation0], 12
    %167 = vst.msk [vmem:[%s166] sm:$0x30] %vm162, %v161
    %s168 = scalar_lea.vmem [#allocation0], 18
    %169 = vst.msk [vmem:[%s168] sm:$0xc0] %vm162, %v161
    %s170 = scalar_lea.vmem %s0, 17
    %v171 = vld [vmem:[%s170] sm:$0x1]
    %s172 = scalar_lea.vmem %s0, 77
    %s173 = smov 6
    %v174 = vld [vmem:[%s172] ss:$-28 sm:%s173]
    %vm175 = vcmask 1042433
    %v176 = vsel %vm175, %v174, %v171
    %s177 = scalar_lea.vmem %s0, 137
    %s178 = smov 24
    %v179 = vld [vmem:[%s177] ss:$-28 sm:%s178]
    %vm180 = vcmask 1044483
    %v181 = vsel %vm180, %v179, %v176
    %s182 = scalar_lea.vmem %s0, 197
    %s183 = smov 96
    %v184 = vld [vmem:[%s182] ss:$-28 sm:%s183]
    %vm185 = vcmask 1046533
    %v186 = vsel %vm185, %v184, %v181
    %s187 = scalar_lea.vmem %s0, 54
    %v188 = vld [vmem:[%s187] sm:$0x80]
    %vm189 = vcmask 1047559
    %v190 = vsel %vm189, %v188, %v186
    %191 = vrot.lane.b32.xlu0 %v190, 32
    %v192 = vpop.permute.xlu0 %191
    %vm193 = vcmask 523520
    %s194 = scalar_lea.vmem [#allocation0], 32
    %195 = vst.msk [vmem:[%s194] sm:$0x3] %vm193, %v192
    %s196 = scalar_lea.vmem [#allocation0], 38
    %197 = vst.msk [vmem:[%s196] sm:$0xc] %vm193, %v192
    %s198 = scalar_lea.vmem [#allocation0], 44
    %199 = vst.msk [vmem:[%s198] sm:$0x30] %vm193, %v192
    %s200 = scalar_lea.vmem [#allocation0], 50
    %201 = vst.msk [vmem:[%s200] sm:$0xc0] %vm193, %v192
    %s203 = sshllo.u32 0, 2
    %v205 = vld [vmem:[#allocation0] sm:%s203]
    %s206 = sshllo.u32 0, 2
    %207 = vst [vmem:[%s1] sm:%s206] %v205
    %s208 = scalar_lea.vmem [#allocation0], 8
    %v209 = vld [vmem:[%s208] sm:%s203]
    %s210 = sshllo.u32 0, 2
    %s211 = scalar_lea.vmem %s1, 2
    %212 = vst [vmem:[%s211] sm:%s210] %v209
    %s213 = scalar_lea.vmem [#allocation0], 16
    %v214 = vld [vmem:[%s213] sm:%s203]
    %s215 = sshllo.u32 0, 2
    %s216 = smul.addr 2, 2
    %s217 = scalar_lea.vmem %s1, %s216
    %218 = vst [vmem:[%s217] sm:%s215] %v214
    %s219 = scalar_lea.vmem [#allocation0], 24
    %v220 = vld [vmem:[%s219] sm:%s203]
    %s221 = sshllo.u32 0, 2
    %s222 = smul.addr 2, 3
    %s223 = scalar_lea.vmem %s1, %s222
    %224 = vst [vmem:[%s223] sm:%s221] %v220
    %s225 = scalar_lea.vmem [#allocation0], 32
    %v226 = vld [vmem:[%s225] sm:%s203]
    %s227 = sshllo.u32 0, 2
    %s228 = smul.addr 2, 4
    %s229 = scalar_lea.vmem %s1, %s228
    %230 = vst [vmem:[%s229] sm:%s227] %v226
    %s231 = scalar_lea.vmem [#allocation0], 40
    %v232 = vld [vmem:[%s231] sm:%s203]
    %s233 = sshllo.u32 0, 2
    %s234 = smul.addr 2, 5
    %s235 = scalar_lea.vmem %s1, %s234
    %236 = vst [vmem:[%s235] sm:%s233] %v232
    %s237 = scalar_lea.vmem [#allocation0], 48
    %v238 = vld [vmem:[%s237] sm:%s203]
    %s239 = sshllo.u32 0, 2
    %s240 = smul.addr 2, 6
    %s241 = scalar_lea.vmem %s1, %s240
    %242 = vst [vmem:[%s241] sm:%s239] %v238
    %s243 = scalar_lea.vmem [#allocation0], 56
    %v244 = vld [vmem:[%s243] sm:%s203]
    %s245 = sshllo.u32 0, 2
    %s246 = smul.addr 2, 7
    %s247 = scalar_lea.vmem %s1, %s246
    %248 = vst [vmem:[%s247] sm:%s245] %v244

// kernel: squeeze.6
$region0: #{squeeze.6}
  %s0 = inlined_call_operand.vmem [shape: s32[36], index: 0, kind: input, shape index: {}]
  %s1 = inlined_call_operand.vmem [shape: s32[4,9], index: 1, kind: output, shape index: {}]
  $region1: #{squeeze.6} parent=0
    #allocation0 [shape = 'u8[4096]{0}', space=vmem, size = 0x1000, scoped, tag = 'scoped mem for output reshape']
    #allocation1 [shape = 'u8[4096]{0}', space=vmem, size = 0x1000, scoped, tag = 'scoped mem for input reshape']
    %s3 = sshllo.u32 0, 1
    %v4 = vld [vmem:[%s0] sm:%s3]
    %5 = vst [vmem:[#allocation1] sm:%s3] %v4
    %v6 = vld [vmem:[#allocation1] sm:$0x1]
    %vm7 = vcmask 72704
    %8 = vst.msk [vmem:[#allocation0] sm:$0x1] %vm7, %v6
    %v9 = vld [vmem:[#allocation1] sm:$0x1]
    %10 = vrot.lane.b32.xlu0 %v9, 119
    %v11 = vpop.permute.xlu0 %10
    %vm12 = vcmask 72704
    %s13 = scalar_lea.vmem [#allocation0], 1
    %14 = vst.msk [vmem:[%s13] sm:$0x1] %vm12, %v11
    %v15 = vld [vmem:[#allocation1] sm:$0x1]
    %16 = vrot.lane.b32.xlu0 %v15, 110
    %v17 = vpop.permute.xlu0 %16
    %vm18 = vcmask 72704
    %s19 = scalar_lea.vmem [#allocation0], 2
    %20 = vst.msk [vmem:[%s19] sm:$0x1] %vm18, %v17
    %v21 = vld [vmem:[#allocation1] sm:$0x1]
    %22 = vrot.lane.b32.xlu0 %v21, 101
    %v23 = vpop.permute.xlu0 %22
    %vm24 = vcmask 72704
    %s25 = scalar_lea.vmem [#allocation0], 3
    %26 = vst.msk [vmem:[%s25] sm:$0x1] %vm24, %v23
    %s28 = sshllo.u32 0, 4
    %v30 = vld [vmem:[#allocation0] sm:%s28]
    %s31 = sshllo.u32 0, 4
    %32 = vst [vmem:[%s1] sm:%s31] %v30

// kernel: _lambda_.1
$region0: #{_lambda_.1}
  #allocation0 [shape = 'u32[]', space=smem, size = 0x4, offset = 0x4, fixed_abs, tag = 'smem constant byte address 0x4 - core index']
  #allocation1 [shape = 'u32[144,128]{1,0:T(1,128)}', space=vmem, size = 0x12000, scoped, tag = 'internal scratch']
  #allocation2 [shape = 's32[1]{0}', space=sflag, size = 0x4, scoped, tag = 'scoped memory for _lambda_.1']
  #allocation3 [shape = 'u8[512]{0}', space=smem, size = 0x200, scoped, tag = 'prefetched SMEM operand 0']
  #allocation4 [shape = 'u8[512]{0}', space=smem, size = 0x200, scoped, tag = 'prefetched SMEM operand 1']
  %s0 = inlined_call_operand.vmem [shape: s32[32], index: 0, kind: input, shape index: {}]
  %s1 = inlined_call_operand.vmem [shape: s32[32], index: 1, kind: input, shape index: {}]
  %s2 = inlined_call_operand.vmem [shape: f32[4,3,1024], index: 2, kind: input, shape index: {}]
  %s3 = inlined_call_operand.vmem [shape: f32[4,8,1,256], index: 3, kind: output, shape index: {}]
  %s4 = sld [smem:[#allocation0]]
  $region44: #{_lambda_.1} parent=0
    _
  %s6 = ssub.s32 1, %s4
  %s7 = scalar_select 0, %s6, %s4
  %s8 = sshll.u32 %s0, 4
  %s9 = int_to_ptr.vmem [resolvable:$true] %s8
  %11 = dma.vmem_to_smem %s9, 16, [#allocation3], [#allocation2]
  %s12 = sshll.u32 %s1, 4
  %s13 = int_to_ptr.vmem [resolvable:$true] %s12
  %15 = dma.vmem_to_smem %s13, 16, [#allocation4], [#allocation2]
  %16 = dma.done [#allocation2], 32
  %17 = sfence
  loop: start=0, step=1, limit=34
  $region2: #{_lambda_.1} parent=0 // loop_pre_header
    _
  $region3: #{_lambda_.1} parent=0 // loop_header
    %s19 = sphi 0, %s23
    %p20 = scmp.ge.s32.totalorder %s19, 34
    %s26 = sphi 0, %s38
    %s27 = sphi 0, %s34
    %s28 = sphi 0, %s26
    %s29 = sphi 0, %s27
    %s30 = sphi 0, %s28
    %s31 = sphi 0, %s29
    %s41 = sphi 0, %s43
    %s44 = sphi 0, %s41
    %s45 = sphi 0, %s44
    %s61 = sphi 0, %s45
    %s69 = sphi 0, %s71
    %s72 = sphi 0, %s69
    %s73 = sphi 0, %s72
    %s89 = sphi 0, %s73
  $region4: #{_lambda_.1} parent=0 // loop_header_branch
    %22 = sbr.rel (%p20) target = $region8
  $region5: #{_lambda_.1} parent=0 // loop_body
    %s24 = ssub.s32 %s19, 1
    %s25 = ssub.s32 %s19, 2
    %s32 = sadd.s32 1, %s27
    %p33 = scmp.ge.s32.totalorder %s32, 8
    %s34 = scalar_select %p33, 0, %s32
    %s35 = sadd.s32 1, %s26
    %s36 = scalar_select %p33, %s35, %s26
    %p37 = scmp.ge.s32.totalorder %s36, 4
    %s38 = scalar_select %p37, 0, %s36
    %s39 = ssub.s32 %s26, %s38
    %p40 = scmp.eq.s32.totalorder %s39, 0
    %s42 = sadd.s32 %s41, 1
    %s43 = scalar_select %p40, %s41, %s42
    %p46 = pneg %p40
    %p47 = scmp.eq.s32.totalorder %s19, 31
    %p48 = por %p46, %p47
    %p49 = scmp.ne.s32.totalorder %s41, %s44
    %p50 = scmp.eq.s32.totalorder %s19, 0
    %p51 = por %p49, %p50
    %p52 = scmp.ne.s32.totalorder %s41, %s44
    %p53 = scmp.eq.s32.totalorder %s24, 31
    %p54 = por %p52, %p53
    %p55 = scmp.ne.s32.totalorder %s44, %s45
    %p56 = scmp.eq.s32.totalorder %s24, 0
    %p57 = por %p55, %p56
    %p58 = scmp.ne.s32.totalorder %s44, %s45
    %p59 = scmp.eq.s32.totalorder %s25, 31
    %p60 = por %p58, %p59
    %p62 = scmp.ne.s32.totalorder %s45, %s61
    %p63 = scmp.eq.s32.totalorder %s25, 0
    %p64 = por %p62, %p63
    %s65 = ssub.s32 %s26, %s38
    %s66 = ssub.s32 %s27, %s34
    %s67 = sor.u32 %s65, %s66
    %p68 = scmp.eq.s32.totalorder %s67, 0
    %s70 = sadd.s32 %s69, 1
    %s71 = scalar_select %p68, %s69, %s70
    %p74 = pneg %p68
    %p75 = scmp.eq.s32.totalorder %s19, 31
    %p76 = por %p74, %p75
    %p77 = scmp.ne.s32.totalorder %s69, %s72
    %p78 = scmp.eq.s32.totalorder %s19, 0
    %p79 = por %p77, %p78
    %p80 = scmp.ne.s32.totalorder %s69, %s72
    %p81 = scmp.eq.s32.totalorder %s24, 31
    %p82 = por %p80, %p81
    %p83 = scmp.ne.s32.totalorder %s72, %s73
    %p84 = scmp.eq.s32.totalorder %s24, 0
    %p85 = por %p83, %p84
    %p86 = scmp.ne.s32.totalorder %s72, %s73
    %p87 = scmp.eq.s32.totalorder %s25, 31
    %p88 = por %p86, %p87
    %p90 = scmp.ne.s32.totalorder %s73, %s89
    %p91 = scmp.eq.s32.totalorder %s25, 0
    %p92 = por %p90, %p91
    %p93 = scmp.le.s32.totalorder 1, %s19
    %p94 = scmp.lt.s32.totalorder %s19, 33
    %p95 = pnand %p93, %p94
    %p96 = pneg %p95
    // Predicated region
    $region9: #{_lambda_.1} parent=5 // pred_check
      _
    $region10: #{_lambda_.1} parent=5 // pred_check_branch
      %98 = sbr.rel (%p95) target = $region12
    $region11: #{_lambda_.1} parent=5 // pred_region
      %s99 = ssub.s32 %s19, 1
    $region12: #{_lambda_.1} parent=5 // pred_fallthru
      _
    %p100 = scmp.lt.s32.totalorder %s19, 32
    // Predicated region
    $region13: #{_lambda_.1} parent=5 // pred_check
      %p101 = pneg %p100
    $region14: #{_lambda_.1} parent=5 // pred_check_branch
      %103 = sbr.rel (%p101) target = $region16
    $region15: #{_lambda_.1} parent=5 // pred_region
      // Predicated region
      $region17: #{_lambda_.1} parent=15 // pred_check
        %p104 = pneg %p51
      $region18: #{_lambda_.1} parent=15 // pred_check_branch
        %106 = sbr.rel (%p104) target = $region20
      $region19: #{_lambda_.1} parent=15 // pred_region
        %p107 = scmp.lt.s32.totalorder %s26, 3
        %s108 = scalar_select %p107, %s26, 3
        %s109 = smul.addr %s108, 8
        %s110 = smul.addr %s109, 4
        %s111 = scalar_lea.vmem %s2, %s110
      $region20: #{_lambda_.1} parent=15 // pred_fallthru
        _
    $region16: #{_lambda_.1} parent=5 // pred_fallthru
      _
    %p112 = scmp.le.s32.totalorder 1, %s19
    %p113 = scmp.lt.s32.totalorder %s19, 33
    %p114 = pnand %p112, %p113
    %p115 = pneg %p114
    // Predicated region
    $region21: #{_lambda_.1} parent=5 // pred_check
      _
    $region22: #{_lambda_.1} parent=5 // pred_check_branch
      %117 = sbr.rel (%p114) target = $region24
    $region23: #{_lambda_.1} parent=5 // pred_region
      %s118 = ssub.s32 %s19, 1
      %p119 = scmp.lt.s32.totalorder %s28, 3
      %s120 = scalar_select %p119, %s28, 3
      %s121 = smul.addr %s120, 8
      %s122 = smul.addr %s121, 4
      %s123 = scalar_lea.vmem %s2, %s122
      %p124 = pneg %p57
      %p125 = pneg %p54
      %p126 = pneg %p85
      %p127 = pneg %p82
      %p128 = scmp.lt.s32.totalorder %s28, 3
      %s129 = scalar_select %p128, %s28, 3
      %p130 = scmp.lt.s32.totalorder %s29, 7
      %s131 = scalar_select %p130, %s29, 7
      %s132 = smul.addr %s131, 2
      %s133 = smul.addr %s129, 16
      %s134 = sadd.s32 %s132, %s133
      %s135 = scalar_lea.vmem %s3, %s134
      %p136 = scmp.lt.s32.totalorder %s28, 3
      %s137 = scalar_select %p136, %s28, 3
      %s138 = smul.addr %s137, 8
      %s139 = smul.addr %s138, 4
      %s140 = scalar_lea.vmem %s2, %s139
      %p141 = scmp.lt.s32.totalorder %s28, 3
      %s142 = scalar_select %p141, %s28, 3
      %p143 = scmp.lt.s32.totalorder %s29, 7
      %s144 = scalar_select %p143, %s29, 7
      %s145 = smul.addr %s144, 2
      %s146 = smul.addr %s142, 16
      %s147 = sadd.s32 %s145, %s146
      %s148 = scalar_lea.vmem %s3, %s147
      %s149 = smul.u32 %s29, 256
      %v150 = vlaneseq
      %v151 = vshrl.u32 %v150, 7
      %v152 = vadd.s32 %v151, 8
      %v153 = vadd.s32 %v151, 16
      %v154 = vadd.s32 %v151, 24
      %v155 = vadd.s32 %v151, 32
      %v156 = vadd.s32 %v151, 40
      %v157 = vadd.s32 %v151, 48
      %v158 = vadd.s32 %v151, 56
      %v159 = vadd.s32 %v151, 64
      %v160 = vadd.s32 %v151, 72
      %v161 = vadd.s32 %v151, 80
      %v162 = vadd.s32 %v151, 88
      %v163 = vadd.s32 %v151, 96
      %v164 = vadd.s32 %v151, 104
      %v165 = vadd.s32 %v151, 112
      %v166 = vadd.s32 %v151, 120
      %v167 = vadd.s32 %v151, 128
      %v168 = vadd.s32 %v151, 136
      %v169 = vadd.s32 %v151, 144
      %v170 = vadd.s32 %v151, 152
      %v171 = vadd.s32 %v151, 160
      %v172 = vadd.s32 %v151, 168
      %v173 = vadd.s32 %v151, 176
      %v174 = vadd.s32 %v151, 184
      %v175 = vadd.s32 %v151, 192
      %v176 = vadd.s32 %v151, 200
      %v177 = vadd.s32 %v151, 208
      %v178 = vadd.s32 %v151, 216
      %v179 = vadd.s32 %v151, 224
      %v180 = vadd.s32 %v151, 232
      %v181 = vadd.s32 %v151, 240
      %v182 = vadd.s32 %v151, 248
      %v183 = vstv %s149
      %v184 = vadd.s32 %v183, %v151
      %v185 = vadd.s32 %v183, %v152
      %v186 = vadd.s32 %v183, %v153
      %v187 = vadd.s32 %v183, %v154
      %v188 = vadd.s32 %v183, %v155
      %v189 = vadd.s32 %v183, %v156
      %v190 = vadd.s32 %v183, %v157
      %v191 = vadd.s32 %v183, %v158
      %v192 = vadd.s32 %v183, %v159
      %v193 = vadd.s32 %v183, %v160
      %v194 = vadd.s32 %v183, %v161
      %v195 = vadd.s32 %v183, %v162
      %v196 = vadd.s32 %v183, %v163
      %v197 = vadd.s32 %v183, %v164
      %v198 = vadd.s32 %v183, %v165
      %v199 = vadd.s32 %v183, %v166
      %v200 = vadd.s32 %v183, %v167
      %v201 = vadd.s32 %v183, %v168
      %v202 = vadd.s32 %v183, %v169
      %v203 = vadd.s32 %v183, %v170
      %v204 = vadd.s32 %v183, %v171
      %v205 = vadd.s32 %v183, %v172
      %v206 = vadd.s32 %v183, %v173
      %v207 = vadd.s32 %v183, %v174
      %v208 = vadd.s32 %v183, %v175
      %v209 = vadd.s32 %v183, %v176
      %v210 = vadd.s32 %v183, %v177
      %v211 = vadd.s32 %v183, %v178
      %v212 = vadd.s32 %v183, %v179
      %v213 = vadd.s32 %v183, %v180
      %v214 = vadd.s32 %v183, %v181
      %v215 = vadd.s32 %v183, %v182
      %v216 = vcvt.s32.f32 %v184
      %v217 = vcvt.s32.f32 %v185
      %v218 = vcvt.s32.f32 %v186
      %v219 = vcvt.s32.f32 %v187
      %v220 = vcvt.s32.f32 %v188
      %v221 = vcvt.s32.f32 %v189
      %v222 = vcvt.s32.f32 %v190
      %v223 = vcvt.s32.f32 %v191
      %v224 = vcvt.s32.f32 %v192
      %v225 = vcvt.s32.f32 %v193
      %v226 = vcvt.s32.f32 %v194
      %v227 = vcvt.s32.f32 %v195
      %v228 = vcvt.s32.f32 %v196
      %v229 = vcvt.s32.f32 %v197
      %v230 = vcvt.s32.f32 %v198
      %v231 = vcvt.s32.f32 %v199
      %v232 = vcvt.s32.f32 %v200
      %v233 = vcvt.s32.f32 %v201
      %v234 = vcvt.s32.f32 %v202
      %v235 = vcvt.s32.f32 %v203
      %v236 = vcvt.s32.f32 %v204
      %v237 = vcvt.s32.f32 %v205
      %v238 = vcvt.s32.f32 %v206
      %v239 = vcvt.s32.f32 %v207
      %v240 = vcvt.s32.f32 %v208
      %v241 = vcvt.s32.f32 %v209
      %v242 = vcvt.s32.f32 %v210
      %v243 = vcvt.s32.f32 %v211
      %v244 = vcvt.s32.f32 %v212
      %v245 = vcvt.s32.f32 %v213
      %v246 = vcvt.s32.f32 %v214
      %v247 = vcvt.s32.f32 %v215
      %s248 = smul.u32 %s28, 8
      %s249 = sadd.s32 %s248, %s29
      %s250 = sld [smem:[#allocation3 + %s249]]
      %s251 = sld [smem:[#allocation4 + %s249]]
      // While loop
      $region25: #{_lambda_.1} parent=23 // loop_pre_header
        _
      $region26: #{_lambda_.1} parent=23 // loop_header
        %s253 = sphi %s250, %s255
        %p254 = scmp.ge.s32.totalorder %s253, %s251
        %v258 = vphi 0.0, %v641
        %v259 = vphi 0.0, %v642
      $region27: #{_lambda_.1} parent=23 // loop_header_branch
        %257 = sbr.rel (%p254) target = $region31
      $region28: #{_lambda_.1} parent=23 // loop_body
        %s260 = smul.u32 %s253, 256
        %s261 = sshra.s32 %s260, 7
        %s262 = sand.u32 %s260, 127
        %s263 = smul.addr %s261, 4
        %s264 = scalar_lea.vmem %s140, %s263
        %v265 = vld [vmem:[%s264] sm:$0x77]
        %v267 = vlaneseq
        %v268 = vshrl.u32 %v267, 7
        %v269 = vsub.s32 0, %v268
        %v270 = vrot.slane %v265, %v269
        %v271 = vlaneseq
        %v272 = vshrl.u32 %v271, 7
        %v273 = vsub.s32 4, %v272
        %v274 = vrot.slane %v265, %v273
        %v277 = vlaneseq
        %v278 = vshrl.u32 %v277, 7
        %v279 = vsub.s32 0, %v278
        %v280 = vrot.slane %v270, %v279
        %v281 = vlaneseq
        %v282 = vshrl.u32 %v281, 7
        %v283 = vsub.s32 0, %v282
        %v284 = vrot.slane %v274, %v283
        %vm285 = vcmp.eq.f32.partialorder %v280, %v216
        %vm286 = vcmp.eq.f32.partialorder %v284, %v216
        %vm287 = vcmp.eq.f32.partialorder %v280, %v217
        %vm288 = vcmp.eq.f32.partialorder %v284, %v217
        %vm289 = vcmp.eq.f32.partialorder %v280, %v218
        %vm290 = vcmp.eq.f32.partialorder %v284, %v218
        %vm291 = vcmp.eq.f32.partialorder %v280, %v219
        %vm292 = vcmp.eq.f32.partialorder %v284, %v219
        %vm293 = vcmp.eq.f32.partialorder %v280, %v220
        %vm294 = vcmp.eq.f32.partialorder %v284, %v220
        %vm295 = vcmp.eq.f32.partialorder %v280, %v221
        %vm296 = vcmp.eq.f32.partialorder %v284, %v221
        %vm297 = vcmp.eq.f32.partialorder %v280, %v222
        %vm298 = vcmp.eq.f32.partialorder %v284, %v222
        %vm299 = vcmp.eq.f32.partialorder %v280, %v223
        %vm300 = vcmp.eq.f32.partialorder %v284, %v223
        %vm301 = vcmp.eq.f32.partialorder %v280, %v224
        %vm302 = vcmp.eq.f32.partialorder %v284, %v224
        %vm303 = vcmp.eq.f32.partialorder %v280, %v225
        %vm304 = vcmp.eq.f32.partialorder %v284, %v225
        %vm305 = vcmp.eq.f32.partialorder %v280, %v226
        %vm306 = vcmp.eq.f32.partialorder %v284, %v226
        %vm307 = vcmp.eq.f32.partialorder %v280, %v227
        %vm308 = vcmp.eq.f32.partialorder %v284, %v227
        %vm309 = vcmp.eq.f32.partialorder %v280, %v228
        %vm310 = vcmp.eq.f32.partialorder %v284, %v228
        %vm311 = vcmp.eq.f32.partialorder %v280, %v229
        %vm312 = vcmp.eq.f32.partialorder %v284, %v229
        %vm313 = vcmp.eq.f32.partialorder %v280, %v230
        %vm314 = vcmp.eq.f32.partialorder %v284, %v230
        %vm315 = vcmp.eq.f32.partialorder %v280, %v231
        %vm316 = vcmp.eq.f32.partialorder %v284, %v231
        %vm317 = vcmp.eq.f32.partialorder %v280, %v232
        %vm318 = vcmp.eq.f32.partialorder %v284, %v232
        %vm319 = vcmp.eq.f32.partialorder %v280, %v233
        %vm320 = vcmp.eq.f32.partialorder %v284, %v233
        %vm321 = vcmp.eq.f32.partialorder %v280, %v234
        %vm322 = vcmp.eq.f32.partialorder %v284, %v234
        %vm323 = vcmp.eq.f32.partialorder %v280, %v235
        %vm324 = vcmp.eq.f32.partialorder %v284, %v235
        %vm325 = vcmp.eq.f32.partialorder %v280, %v236
        %vm326 = vcmp.eq.f32.partialorder %v284, %v236
        %vm327 = vcmp.eq.f32.partialorder %v280, %v237
        %vm328 = vcmp.eq.f32.partialorder %v284, %v237
        %vm329 = vcmp.eq.f32.partialorder %v280, %v238
        %vm330 = vcmp.eq.f32.partialorder %v284, %v238
        %vm331 = vcmp.eq.f32.partialorder %v280, %v239
        %vm332 = vcmp.eq.f32.partialorder %v284, %v239
        %vm333 = vcmp.eq.f32.partialorder %v280, %v240
        %vm334 = vcmp.eq.f32.partialorder %v284, %v240
        %vm335 = vcmp.eq.f32.partialorder %v280, %v241
        %vm336 = vcmp.eq.f32.partialorder %v284, %v241
        %vm337 = vcmp.eq.f32.partialorder %v280, %v242
        %vm338 = vcmp.eq.f32.partialorder %v284, %v242
        %vm339 = vcmp.eq.f32.partialorder %v280, %v243
        %vm340 = vcmp.eq.f32.partialorder %v284, %v243
        %vm341 = vcmp.eq.f32.partialorder %v280, %v244
        %vm342 = vcmp.eq.f32.partialorder %v284, %v244
        %vm343 = vcmp.eq.f32.partialorder %v280, %v245
        %vm344 = vcmp.eq.f32.partialorder %v284, %v245
        %vm345 = vcmp.eq.f32.partialorder %v280, %v246
        %vm346 = vcmp.eq.f32.partialorder %v284, %v246
        %vm347 = vcmp.eq.f32.partialorder %v280, %v247
        %vm348 = vcmp.eq.f32.partialorder %v284, %v247
        %v349 = vsel %vm285, 1, 0
        %v350 = vsel %vm286, 1, 0
        %v351 = vsel %vm287, 1, 0
        %v352 = vsel %vm288, 1, 0
        %v353 = vsel %vm289, 1, 0
        %v354 = vsel %vm290, 1, 0
        %v355 = vsel %vm291, 1, 0
        %v356 = vsel %vm292, 1, 0
        %v357 = vsel %vm293, 1, 0
        %v358 = vsel %vm294, 1, 0
        %v359 = vsel %vm295, 1, 0
        %v360 = vsel %vm296, 1, 0
        %v361 = vsel %vm297, 1, 0
        %v362 = vsel %vm298, 1, 0
        %v363 = vsel %vm299, 1, 0
        %v364 = vsel %vm300, 1, 0
        %v365 = vsel %vm301, 1, 0
        %v366 = vsel %vm302, 1, 0
        %v367 = vsel %vm303, 1, 0
        %v368 = vsel %vm304, 1, 0
        %v369 = vsel %vm305, 1, 0
        %v370 = vsel %vm306, 1, 0
        %v371 = vsel %vm307, 1, 0
        %v372 = vsel %vm308, 1, 0
        %v373 = vsel %vm309, 1, 0
        %v374 = vsel %vm310, 1, 0
        %v375 = vsel %vm311, 1, 0
        %v376 = vsel %vm312, 1, 0
        %v377 = vsel %vm313, 1, 0
        %v378 = vsel %vm314, 1, 0
        %v379 = vsel %vm315, 1, 0
        %v380 = vsel %vm316, 1, 0
        %v381 = vsel %vm317, 1, 0
        %v382 = vsel %vm318, 1, 0
        %v383 = vsel %vm319, 1, 0
        %v384 = vsel %vm320, 1, 0
        %v385 = vsel %vm321, 1, 0
        %v386 = vsel %vm322, 1, 0
        %v387 = vsel %vm323, 1, 0
        %v388 = vsel %vm324, 1, 0
        %v389 = vsel %vm325, 1, 0
        %v390 = vsel %vm326, 1, 0
        %v391 = vsel %vm327, 1, 0
        %v392 = vsel %vm328, 1, 0
        %v393 = vsel %vm329, 1, 0
        %v394 = vsel %vm330, 1, 0
        %v395 = vsel %vm331, 1, 0
        %v396 = vsel %vm332, 1, 0
        %v397 = vsel %vm333, 1, 0
        %v398 = vsel %vm334, 1, 0
        %v399 = vsel %vm335, 1, 0
        %v400 = vsel %vm336, 1, 0
        %v401 = vsel %vm337, 1, 0
        %v402 = vsel %vm338, 1, 0
        %v403 = vsel %vm339, 1, 0
        %v404 = vsel %vm340, 1, 0
        %v405 = vsel %vm341, 1, 0
        %v406 = vsel %vm342, 1, 0
        %v407 = vsel %vm343, 1, 0
        %v408 = vsel %vm344, 1, 0
        %v409 = vsel %vm345, 1, 0
        %v410 = vsel %vm346, 1, 0
        %v411 = vsel %vm347, 1, 0
        %v412 = vsel %vm348, 1, 0
        %v413 = vcvt.s32.f32 %v349
        %v414 = vcvt.s32.f32 %v350
        %v415 = vcvt.s32.f32 %v351
        %v416 = vcvt.s32.f32 %v352
        %v417 = vcvt.s32.f32 %v353
        %v418 = vcvt.s32.f32 %v354
        %v419 = vcvt.s32.f32 %v355
        %v420 = vcvt.s32.f32 %v356
        %v421 = vcvt.s32.f32 %v357
        %v422 = vcvt.s32.f32 %v358
        %v423 = vcvt.s32.f32 %v359
        %v424 = vcvt.s32.f32 %v360
        %v425 = vcvt.s32.f32 %v361
        %v426 = vcvt.s32.f32 %v362
        %v427 = vcvt.s32.f32 %v363
        %v428 = vcvt.s32.f32 %v364
        %v429 = vcvt.s32.f32 %v365
        %v430 = vcvt.s32.f32 %v366
        %v431 = vcvt.s32.f32 %v367
        %v432 = vcvt.s32.f32 %v368
        %v433 = vcvt.s32.f32 %v369
        %v434 = vcvt.s32.f32 %v370
        %v435 = vcvt.s32.f32 %v371
        %v436 = vcvt.s32.f32 %v372
        %v437 = vcvt.s32.f32 %v373
        %v438 = vcvt.s32.f32 %v374
        %v439 = vcvt.s32.f32 %v375
        %v440 = vcvt.s32.f32 %v376
        %v441 = vcvt.s32.f32 %v377
        %v442 = vcvt.s32.f32 %v378
        %v443 = vcvt.s32.f32 %v379
        %v444 = vcvt.s32.f32 %v380
        %v445 = vcvt.s32.f32 %v381
        %v446 = vcvt.s32.f32 %v382
        %v447 = vcvt.s32.f32 %v383
        %v448 = vcvt.s32.f32 %v384
        %v449 = vcvt.s32.f32 %v385
        %v450 = vcvt.s32.f32 %v386
        %v451 = vcvt.s32.f32 %v387
        %v452 = vcvt.s32.f32 %v388
        %v453 = vcvt.s32.f32 %v389
        %v454 = vcvt.s32.f32 %v390
        %v455 = vcvt.s32.f32 %v391
        %v456 = vcvt.s32.f32 %v392
        %v457 = vcvt.s32.f32 %v393
        %v458 = vcvt.s32.f32 %v394
        %v459 = vcvt.s32.f32 %v395
        %v460 = vcvt.s32.f32 %v396
        %v461 = vcvt.s32.f32 %v397
        %v462 = vcvt.s32.f32 %v398
        %v463 = vcvt.s32.f32 %v399
        %v464 = vcvt.s32.f32 %v400
        %v465 = vcvt.s32.f32 %v401
        %v466 = vcvt.s32.f32 %v402
        %v467 = vcvt.s32.f32 %v403
        %v468 = vcvt.s32.f32 %v404
        %v469 = vcvt.s32.f32 %v405
        %v470 = vcvt.s32.f32 %v406
        %v471 = vcvt.s32.f32 %v407
        %v472 = vcvt.s32.f32 %v408
        %v473 = vcvt.s32.f32 %v409
        %v474 = vcvt.s32.f32 %v410
        %v475 = vcvt.s32.f32 %v411
        %v476 = vcvt.s32.f32 %v412
        %v477 = vpack.c.bf16 %v415, %v413
        %v478 = vpack.c.bf16 %v416, %v414
        %v479 = vpack.c.bf16 %v419, %v417
        %v480 = vpack.c.bf16 %v420, %v418
        %v481 = vpack.c.bf16 %v423, %v421
        %v482 = vpack.c.bf16 %v424, %v422
        %v483 = vpack.c.bf16 %v427, %v425
        %v484 = vpack.c.bf16 %v428, %v426
        %v485 = vpack.c.bf16 %v431, %v429
        %v486 = vpack.c.bf16 %v432, %v430
        %v487 = vpack.c.bf16 %v435, %v433
        %v488 = vpack.c.bf16 %v436, %v434
        %v489 = vpack.c.bf16 %v439, %v437
        %v490 = vpack.c.bf16 %v440, %v438
        %v491 = vpack.c.bf16 %v443, %v441
        %v492 = vpack.c.bf16 %v444, %v442
        %v493 = vpack.c.bf16 %v447, %v445
        %v494 = vpack.c.bf16 %v448, %v446
        %v495 = vpack.c.bf16 %v451, %v449
        %v496 = vpack.c.bf16 %v452, %v450
        %v497 = vpack.c.bf16 %v455, %v453
        %v498 = vpack.c.bf16 %v456, %v454
        %v499 = vpack.c.bf16 %v459, %v457
        %v500 = vpack.c.bf16 %v460, %v458
        %v501 = vpack.c.bf16 %v463, %v461
        %v502 = vpack.c.bf16 %v464, %v462
        %v503 = vpack.c.bf16 %v467, %v465
        %v504 = vpack.c.bf16 %v468, %v466
        %v505 = vpack.c.bf16 %v471, %v469
        %v506 = vpack.c.bf16 %v472, %v470
        %v507 = vpack.c.bf16 %v475, %v473
        %v508 = vpack.c.bf16 %v476, %v474
        %v509 = vcombine.high %v265, %v265
        %v511 = vpack.c.bf16 %v265, %v265
        %v512 = vpack.c.bf16 %v509, %v509
        %v513 = vunpack.c.l.bf16 %v511
        %v514 = vunpack.c.l.bf16 %v512
        %v517 = vcombine.low %v513, %v514
        %v519 = vsub.f32 %v265, %v517
        %v521 = vcombine.high %v519, %v519
        %v523 = vpack.c.bf16 %v519, %v519
        %v524 = vpack.c.bf16 %v521, %v521
        %v526 = vshrl.u32 %v511, 16
        %v528 = vshll.u32 %v511, 16
        %v530 = vrot.slane %v528, 1
        %v531 = vor.u32 %v526, %v530
        %v533 = vshrl.u32 %v512, 16
        %v535 = vshll.u32 %v512, 16
        %v537 = vrot.slane %v535, 1
        %v538 = vor.u32 %v533, %v537
        %541 = vmatprep.subr.bf16.mxu0 %v478
        %542 = vmatpush1.bf16.xpose.msra.mxu0 %v477
        %543 = vmatprep.subr.bf16.mxu0 %v480
        %544 = vmatpush1.bf16.xpose.msra.mxu0 %v479
        %545 = vmatprep.subr.bf16.mxu0 %v482
        %546 = vmatpush1.bf16.xpose.msra.mxu0 %v481
        %547 = vmatprep.subr.bf16.mxu0 %v484
        %548 = vmatpush1.bf16.xpose.msra.mxu0 %v483
        %549 = vmatprep.subr.bf16.mxu0 %v486
        %550 = vmatpush1.bf16.xpose.msra.mxu0 %v485
        %551 = vmatprep.subr.bf16.mxu0 %v488
        %552 = vmatpush1.bf16.xpose.msra.mxu0 %v487
        %553 = vmatprep.subr.bf16.mxu0 %v490
        %554 = vmatpush1.bf16.xpose.msra.mxu0 %v489
        %555 = vmatprep.subr.bf16.mxu0 %v492
        %556 = vmatpush1.bf16.xpose.msra.mxu0 %v491
        %557 = vmatprep.subr.bf16.mxu0 %v494
        %558 = vmatpush1.bf16.xpose.msra.mxu0 %v493
        %559 = vmatprep.subr.bf16.mxu0 %v496
        %560 = vmatpush1.bf16.xpose.msra.mxu0 %v495
        %561 = vmatprep.subr.bf16.mxu0 %v498
        %562 = vmatpush1.bf16.xpose.msra.mxu0 %v497
        %563 = vmatprep.subr.bf16.mxu0 %v500
        %564 = vmatpush1.bf16.xpose.msra.mxu0 %v499
        %565 = vmatprep.subr.bf16.mxu0 %v502
        %566 = vmatpush1.bf16.xpose.msra.mxu0 %v501
        %567 = vmatprep.subr.bf16.mxu0 %v504
        %568 = vmatpush1.bf16.xpose.msra.mxu0 %v503
        %569 = vmatprep.subr.bf16.mxu0 %v506
        %570 = vmatpush1.bf16.xpose.msra.mxu0 %v505
        %571 = vmatprep.subr.bf16.mxu0 %v508
        %572 = vmatpush1.bf16.xpose.msra.mxu0 %v507
        %573 = vmatprep.mubr.bf16.mxu0 %v538
        %574 = vmatmul.mubr.bf16.gmra.mrb[0].mxu0 %v531
        %v575 = vpop.f32.mrb[0].mxu0
        %v576 = vadd.f32 0.0, %v575
        %v577 = vpop.f32.mrb[0].mxu0
        %v578 = vadd.f32 0.0, %v577
        %v579 = vpop.f32.mrb[0].mxu0
        %v580 = vpop.f32.mrb[0].mxu0
        %581 = vdwg.mxu0
        %v582 = vadd.f32 %v258, %v576
        %v583 = vadd.f32 %v259, %v578
        %v585 = vshrl.u32 %v523, 16
        %v587 = vshll.u32 %v523, 16
        %v589 = vrot.slane %v587, 1
        %v590 = vor.u32 %v585, %v589
        %v592 = vshrl.u32 %v524, 16
        %v594 = vshll.u32 %v524, 16
        %v596 = vrot.slane %v594, 1
        %v597 = vor.u32 %v592, %v596
        %600 = vmatprep.subr.bf16.mxu0 %v478
        %601 = vmatpush1.bf16.xpose.msra.mxu0 %v477
        %602 = vmatprep.subr.bf16.mxu0 %v480
        %603 = vmatpush1.bf16.xpose.msra.mxu0 %v479
        %604 = vmatprep.subr.bf16.mxu0 %v482
        %605 = vmatpush1.bf16.xpose.msra.mxu0 %v481
        %606 = vmatprep.subr.bf16.mxu0 %v484
        %607 = vmatpush1.bf16.xpose.msra.mxu0 %v483
        %608 = vmatprep.subr.bf16.mxu0 %v486
        %609 = vmatpush1.bf16.xpose.msra.mxu0 %v485
        %610 = vmatprep.subr.bf16.mxu0 %v488
        %611 = vmatpush1.bf16.xpose.msra.mxu0 %v487
        %612 = vmatprep.subr.bf16.mxu0 %v490
        %613 = vmatpush1.bf16.xpose.msra.mxu0 %v489
        %614 = vmatprep.subr.bf16.mxu0 %v492
        %615 = vmatpush1.bf16.xpose.msra.mxu0 %v491
        %616 = vmatprep.subr.bf16.mxu0 %v494
        %617 = vmatpush1.bf16.xpose.msra.mxu0 %v493
        %618 = vmatprep.subr.bf16.mxu0 %v496
        %619 = vmatpush1.bf16.xpose.msra.mxu0 %v495
        %620 = vmatprep.subr.bf16.mxu0 %v498
        %621 = vmatpush1.bf16.xpose.msra.mxu0 %v497
        %622 = vmatprep.subr.bf16.mxu0 %v500
        %623 = vmatpush1.bf16.xpose.msra.mxu0 %v499
        %624 = vmatprep.subr.bf16.mxu0 %v502
        %625 = vmatpush1.bf16.xpose.msra.mxu0 %v501
        %626 = vmatprep.subr.bf16.mxu0 %v504
        %627 = vmatpush1.bf16.xpose.msra.mxu0 %v503
        %628 = vmatprep.subr.bf16.mxu0 %v506
        %629 = vmatpush1.bf16.xpose.msra.mxu0 %v505
        %630 = vmatprep.subr.bf16.mxu0 %v508
        %631 = vmatpush1.bf16.xpose.msra.mxu0 %v507
        %632 = vmatprep.mubr.bf16.mxu0 %v597
        %633 = vmatmul.mubr.bf16.gmra.mrb[0].mxu0 %v590
        %v634 = vpop.f32.mrb[0].mxu0
        %v635 = vadd.f32 0.0, %v634
        %v636 = vpop.f32.mrb[0].mxu0
        %v637 = vadd.f32 0.0, %v636
        %v638 = vpop.f32.mrb[0].mxu0
        %v639 = vpop.f32.mrb[0].mxu0
        %640 = vdwg.mxu0
        %v641 = vadd.f32 %v582, %v635
        %v642 = vadd.f32 %v583, %v637
      $region29: #{_lambda_.1} parent=23 // loop_footer
        %s255 = sadd.s32 %s253, 1
      $region30: #{_lambda_.1} parent=23 // loop_footer_branch
        %252 = sbr.rel target = $region26
      $region31: #{_lambda_.1} parent=23 // loop_exit
        _
      %v643 = vadd.f32 %v258, 1e-08
      %v644 = vadd.f32 %v259, 1e-08
      %v645 = vrcp.pop %v643
      %v646 = vrcp.pop %v644
      %v649 = vrot.slane %v645, 7
      %v650 = vrot.slane %v646, 7
      %v653 = vmul.f32 %v258, %v649
      %v654 = vmul.f32 %v259, %v650
      %v657 = vcombine.low %v653, %v654
      %v659 = vunpack.c.l.s4 1966171168
      %v660 = vunpack.c.0.s8 %v659
      %v661 = vlaneseq
      %v662 = vshrl.u32 %v661, 7
      %v663 = vsub.s32 %v660, %v662
      %v664 = vrot.slane %v657, %v663
      %v665 = vcombine.high %v664, %v664
      %v667 = vunpack.c.l.s4 1966171168
      %v668 = vunpack.c.0.s8 %v667
      %v669 = vlaneseq
      %v670 = vshrl.u32 %v669, 7
      %v671 = vsub.s32 %v668, %v670
      %v672 = vrot.slane %v665, %v671
      %v674 = vlaneseq
      %vm675 = vcmp.ge.s32.totalorder %v674, 0
      %vm676 = vcmp.lt.s32.totalorder %v674, 256
      %vm677 = vmand %vm675, %vm676
      %678 = vst.msk [vmem:[%s148] sm:$0x3] %vm677, %v672
      %p679 = scmp.lt.s32.totalorder %s28, 3
      %s680 = scalar_select %p679, %s28, 3
      %p681 = scmp.lt.s32.totalorder %s29, 7
      %s682 = scalar_select %p681, %s29, 7
      %s683 = smul.addr %s682, 2
      %s684 = smul.addr %s680, 16
      %s685 = sadd.s32 %s683, %s684
      %s686 = scalar_lea.vmem %s3, %s685
      // Predicated region
      $region32: #{_lambda_.1} parent=23 // pred_check
        %p687 = pneg %p82
      $region33: #{_lambda_.1} parent=23 // pred_check_branch
        %689 = sbr.rel (%p687) target = $region35
      $region34: #{_lambda_.1} parent=23 // pred_region
        _
      $region35: #{_lambda_.1} parent=23 // pred_fallthru
        _
    $region24: #{_lambda_.1} parent=5 // pred_fallthru
      _
    %p690 = scmp.le.s32.totalorder 2, %s19
    // Predicated region
    $region36: #{_lambda_.1} parent=5 // pred_check
      %p691 = pneg %p690
    $region37: #{_lambda_.1} parent=5 // pred_check_branch
      %693 = sbr.rel (%p691) target = $region39
    $region38: #{_lambda_.1} parent=5 // pred_region
      %s694 = ssub.s32 %s19, 2
      // Predicated region
      $region40: #{_lambda_.1} parent=38 // pred_check
        %p695 = pneg %p88
      $region41: #{_lambda_.1} parent=38 // pred_check_branch
        %697 = sbr.rel (%p695) target = $region43
      $region42: #{_lambda_.1} parent=38 // pred_region
        %p698 = scmp.lt.s32.totalorder %s30, 3
        %s699 = scalar_select %p698, %s30, 3
        %p700 = scmp.lt.s32.totalorder %s31, 7
        %s701 = scalar_select %p700, %s31, 7
        %s702 = smul.addr %s701, 2
        %s703 = smul.addr %s699, 16
        %s704 = sadd.s32 %s702, %s703
        %s705 = scalar_lea.vmem %s3, %s704
      $region43: #{_lambda_.1} parent=38 // pred_fallthru
        _
    $region39: #{_lambda_.1} parent=5 // pred_fallthru
      _
  $region6: #{_lambda_.1} parent=0 // loop_footer
    %s23 = sadd.s32 1, %s19
  $region7: #{_lambda_.1} parent=0 // loop_footer_branch
    %18 = sbr.rel target = $region3
  $region8: #{_lambda_.1} parent=0 // loop_exit
    _

</llo_original>
